<compile_context>
chip_gen: v6e
topology: v6e:2x2x1
jax: 0.10.0
libtpu: 0.0.40
codegen_flags: <defaults>
</compile_context>

<pallas_src>
import jax
import jax.numpy as jnp
from jax.experimental import pallas as pl
from jax.experimental.pallas import tpu as pltpu


def feedback_head_kernel(x_ref, mask_ref, w_ref, b_ref, o_ref, acc_ref, den_ref):
    """Fused: dropout(p=0) -> masked mean pooling -> Linear(H, num_labels).

    x_ref    : (1, TL, H)   bf16 last_hidden_state tile (one batch row)
    mask_ref : (1, 1, TL)   f32 attention_mask tile (lane-dense along L)
    w_ref    : (H, NLP)     f32 fc weight, lane-padded to NLP (mult of 128)
    b_ref    : (1, NLP)     f32 fc bias, lane-padded
    o_ref    : (1, 1, NLP)  f32 logits (lane-dense store)
    acc_ref  : (1, H)       f32 running masked sum (VMEM scratch)
    den_ref  : (1, 1)       f32 running mask count (VMEM scratch)
    """
    l = pl.program_id(1)

    @pl.when(l == 0)
    def _init():
        acc_ref[...] = jnp.zeros_like(acc_ref)
        den_ref[...] = jnp.zeros_like(den_ref)

    x = x_ref[0]                                   # (TL, H), bf16
    m = mask_ref[0]                                # (1, TL), f32

    # Masked sum over the sequence tile as an MXU matvec (keeps the
    # multiply + cross-sublane reduction off the VPU/XLU slots); accumulate
    # in f32 scratch to preserve numerics with bf16 inputs.
    acc_ref[...] += jnp.dot(m.astype(x.dtype), x,
                            preferred_element_type=jnp.float32)
    den_ref[...] += jnp.sum(m, axis=-1, keepdims=True)

    @pl.when(l == pl.num_programs(1) - 1)
    def _finalize():
        # NLPPooling mean normalization: clamp matches torch.clamp(min=1e-9).
        denom = jnp.maximum(den_ref[...], 1e-9)                   # (1, 1)
        pooled = acc_ref[...] * pl.reciprocal(denom, approx=True)  # (1, H)
        # fc: Linear(H, num_labels) on the MXU, once per batch row.
        logits = jnp.dot(pooled, w_ref[...],
                         preferred_element_type=jnp.float32)      # (1, NLP)
        o_ref[...] = (logits + b_ref[...]).reshape(o_ref.shape)


def _pick_seq_tile(L, target=512):
    """Largest 128-multiple divisor of L that is <= target (or L itself)."""
    if L <= target:
        return L
    for tl in range(target, 127, -128):
        if tl % 128 == 0 and L % tl == 0:
            return tl
    return L


def feedback_head(hidden, attention_mask, fc_w, fc_b, *, seq_tile=512):
    """hidden: (B, L, H) (bf16 preferred), attention_mask: (B, L)."""
    B, L, H = hidden.shape
    NL = fc_w.shape[1]
    NLP = ((NL + 127) // 128) * 128               # lane-dense padded label dim

    # Lane-pad fc weight/bias so the output store is an unmasked vst.
    w_pad = jnp.zeros((H, NLP), jnp.float32).at[:, :NL].set(
        fc_w.astype(jnp.float32))
    b_pad = jnp.zeros((1, NLP), jnp.float32).at[:, :NL].set(
        fc_b.reshape(1, NL).astype(jnp.float32))

    # Mask with L as the last (lane) dimension, tiled consistently with hidden.
    mask3 = attention_mask.astype(jnp.float32).reshape(B, 1, L)

    TL = _pick_seq_tile(L, seq_tile)
    n_l = L // TL

    grid_spec = pltpu.PrefetchScalarGridSpec(
        num_scalar_prefetch=0,
        grid=(B, n_l),                                    # (parallel, reduction)
        in_specs=[
            pl.BlockSpec((1, TL, H), lambda b, l: (b, l, 0)),   # hidden tile
            pl.BlockSpec((1, 1, TL), lambda b, l: (b, 0, l)),   # mask tile
            pl.BlockSpec((H, NLP), lambda b, l: (0, 0)),        # fc weight
            pl.BlockSpec((1, NLP), lambda b, l: (0, 0)),        # fc bias
        ],
        out_specs=pl.BlockSpec((1, 1, NLP), lambda b, l: (b, 0, 0)),
        scratch_shapes=[
            pltpu.VMEM((1, H), jnp.float32),   # masked-sum accumulator
            pltpu.VMEM((1, 1), jnp.float32),   # mask-count accumulator
        ],
    )

    bytes_accessed = (hidden.size * hidden.dtype.itemsize
                      + mask3.size * 4 + w_pad.size * 4 + b_pad.size * 4
                      + B * NLP * 4)
    cost = pl.CostEstimate(
        flops=2 * B * L * H + 2 * B * H * NLP,
        transcendentals=B,
        bytes_accessed=bytes_accessed,
    )

    out = pl.pallas_call(
        feedback_head_kernel,
        out_shape=jax.ShapeDtypeStruct((B, 1, NLP), jnp.float32),
        grid_spec=grid_spec,
        compiler_params=pltpu.CompilerParams(
            dimension_semantics=("parallel", "arbitrary"),
            vmem_limit_bytes=32 * 1024 * 1024,
        ),
        cost_estimate=cost,
    )(hidden, mask3, w_pad, b_pad)

    return out.reshape(B, NLP)[:, :NL]


def feedback_model_forward(batch, params):
    """Glue: backbone stand-in (embedding lookup) + Pallas head kernel."""
    # Backbone stand-in: deterministic embedding lookup -> last_hidden_state.
    # Keep hidden states in bf16 (halves HBM traffic / VMEM footprint); the
    # kernel accumulates in f32.
    hidden = jnp.take(params["emb"], batch["input_ids"], axis=0)
    hidden = hidden.astype(jnp.bfloat16)                         # (B, L, H)
    return feedback_head(hidden, batch["attention_mask"],
                         params["fc_w"], params["fc_b"])


def feedback_model_reference(batch, params):
    """Pure-JAX reference of the head (same bf16 hidden) for validation."""
    hidden = jnp.take(params["emb"], batch["input_ids"], axis=0)
    hidden = hidden.astype(jnp.bfloat16).astype(jnp.float32)     # (B, L, H)
    mask = batch["attention_mask"].astype(jnp.float32)           # (B, L)
    summed = jnp.sum(hidden * mask[:, :, None], axis=1)          # (B, H)
    denom = jnp.maximum(jnp.sum(mask, axis=1, keepdims=True), 1e-9)
    pooled = summed / denom                                      # (B, H)
    return pooled @ params["fc_w"] + params["fc_b"][None, :]     # (B, NL)


if __name__ == "__main__":
    # Small shapes consistent with the module: batch=2, seq=8, hidden=32,
    # num_labels=6 (Feedback-style multi-target head), vocab=100.
    B, L, H, NUM_LABELS, VOCAB = 2, 8, 32, 6, 100
    INITIALIZER_RANGE = 0.02  # mirrors self.config.initializer_range

    key = jax.random.PRNGKey(0)
    k_ids, k_emb, k_fc = jax.random.split(key, 3)

    input_ids = jax.random.randint(k_ids, (B, L), 0, VOCAB, dtype=jnp.int32)
    # Last two positions padded, like a real tokenized batch.
    attention_mask = jnp.concatenate(
        [jnp.ones((B, L - 2), jnp.float32), jnp.zeros((B, 2), jnp.float32)],
        axis=1,
    )

    params = {
        # Backbone stand-in embedding table.
        "emb": jax.random.normal(k_emb, (VOCAB, H), jnp.float32) * INITIALIZER_RANGE,
        # fc init mirrors _init_weights: normal(0, initializer_range), bias=0.
        "fc_w": jax.random.normal(k_fc, (H, NUM_LABELS), jnp.float32) * INITIALIZER_RANGE,
        "fc_b": jnp.zeros((NUM_LABELS,), jnp.float32),
    }

    batch = {"input_ids": input_ids, "attention_mask": attention_mask}

    out = feedback_model_forward(batch, params)
    out = jax.block_until_ready(out)
    assert out.shape == (B, NUM_LABELS), out.shape
    assert out.dtype == jnp.float32

    # Correctness check against a pure-JAX reference (loose tolerance for the
    # EUP approximate reciprocal used in the mean normalization).
    ref = jax.block_until_ready(feedback_model_reference(batch, params))
    assert jnp.allclose(out, ref, rtol=5e-2, atol=1e-4), (out, ref)

    print("KERNEL_OK")
</pallas_src>

<mosaic_0001>
module attributes {stable_mosaic.version = 11 : i64} {
  func.func @feedback_head_kernel(%arg0: i32, %arg1: i32, %arg2: memref<1x8x32xbf16, #tpu.memory_space<vmem>>, %arg3: memref<1x1x8xf32, #tpu.memory_space<vmem>>, %arg4: memref<32x128xf32, #tpu.memory_space<vmem>>, %arg5: memref<1x128xf32, #tpu.memory_space<vmem>>, %arg6: memref<1x1x128xf32, #tpu.memory_space<vmem>>, %arg7: memref<1x32xf32, #tpu.memory_space<vmem>>, %arg8: memref<1x1xf32, #tpu.memory_space<vmem>>) attributes {dimension_semantics = [#tpu.dimension_semantics<parallel>, #tpu.dimension_semantics<arbitrary>], iteration_bounds = array<i64: 2, 1>, scalar_prefetch = 0 : i64, scratch_operands = 2 : i64, tpu.core_type = #tpu.core_type<tc>, window_params = [{transform_indices = @transform_0, window_bounds = array<i64: 1, 8, 32>}, {transform_indices = @transform_1, window_bounds = array<i64: 1, 1, 8>}, {pipeline_mode = #tpu.pipeline_mode<synchronous>, transform_indices = @transform_2, window_bounds = array<i64: 32, 128>}, {pipeline_mode = #tpu.pipeline_mode<synchronous>, transform_indices = @transform_3, window_bounds = array<i64: 1, 128>}, {transform_indices = @transform_4, window_bounds = array<i64: 1, 1, 128>}]} {
    %c0_i32 = arith.constant 0 : i32
    %0 = arith.cmpi eq, %arg1, %c0_i32 : i32
    %1 = arith.extui %0 : i1 to i32
    %c0_i32_0 = arith.constant 0 : i32
    %2 = arith.cmpi ne, %1, %c0_i32_0 : i32
    scf.if %2 {
      %cst_17 = arith.constant 0.000000e+00 : f32
      %20 = vector.broadcast %cst_17 : f32 to vector<1x32xf32>
      %c0_18 = arith.constant 0 : index
      %c0_19 = arith.constant 0 : index
      %21 = vector.load %arg7[%c0_18, %c0_19] : memref<1x32xf32, #tpu.memory_space<vmem>>, vector<1x32xf32>
      tpu.vector_store %arg7[%c0_18, %c0_19], %20 {strides = array<i32>} : memref<1x32xf32, #tpu.memory_space<vmem>>, vector<1x32xf32>,
      %cst_20 = arith.constant 0.000000e+00 : f32
      %22 = vector.broadcast %cst_20 : f32 to vector<1x1xf32>
      %c0_21 = arith.constant 0 : index
      %c0_22 = arith.constant 0 : index
      %23 = vector.load %arg8[%c0_21, %c0_22] : memref<1x1xf32, #tpu.memory_space<vmem>>, vector<1x1xf32>
      tpu.vector_store %arg8[%c0_21, %c0_22], %22 {strides = array<i32>} : memref<1x1xf32, #tpu.memory_space<vmem>>, vector<1x1xf32>,
    } else {
    }
    %c0 = arith.constant 0 : index
    %c0_1 = arith.constant 0 : index
    %c0_2 = arith.constant 0 : index
    %3 = vector.load %arg2[%c0, %c0_1, %c0_2] : memref<1x8x32xbf16, #tpu.memory_space<vmem>>, vector<1x8x32xbf16>
    %4 = vector.shape_cast %3 : vector<1x8x32xbf16> to vector<8x32xbf16>
    %c0_3 = arith.constant 0 : index
    %c0_4 = arith.constant 0 : index
    %c0_5 = arith.constant 0 : index
    %5 = vector.load %arg3[%c0_3, %c0_4, %c0_5] : memref<1x1x8xf32, #tpu.memory_space<vmem>>, vector<1x1x8xf32>
    %6 = vector.shape_cast %5 : vector<1x1x8xf32> to vector<1x8xf32>
    %c0_6 = arith.constant 0 : index
    %c0_7 = arith.constant 0 : index
    %7 = vector.load %arg7[%c0_6, %c0_7] : memref<1x32xf32, #tpu.memory_space<vmem>>, vector<1x32xf32>
    %8 = arith.truncf %6 : vector<1x8xf32> to vector<1x8xbf16>
    %cst = arith.constant dense<0.000000e+00> : vector<1x32xf32>
    %9 = tpu.matmul %8, %4, %cst {dimension_numbers = #tpu.dot_dimension_numbers<[1], [0], [0], [1], [0, 0, 1, 1], [], []>} : vector<1x8xbf16>, vector<8x32xbf16>, vector<1x32xf32> -> vector<1x32xf32>
    %10 = arith.addf %7, %9 : vector<1x32xf32>
    %c0_8 = arith.constant 0 : index
    %c0_9 = arith.constant 0 : index
    %11 = vector.load %arg7[%c0_8, %c0_9] : memref<1x32xf32, #tpu.memory_space<vmem>>, vector<1x32xf32>
    tpu.vector_store %arg7[%c0_8, %c0_9], %10 {strides = array<i32>} : memref<1x32xf32, #tpu.memory_space<vmem>>, vector<1x32xf32>,
    %c0_10 = arith.constant 0 : index
    %c0_11 = arith.constant 0 : index
    %12 = vector.load %arg8[%c0_10, %c0_11] : memref<1x1xf32, #tpu.memory_space<vmem>>, vector<1x1xf32>
    %cst_12 = arith.constant dense<0.000000e+00> : vector<1xf32>
    %13 = vector.multi_reduction <add>, %6, %cst_12 [1] : vector<1x8xf32> to vector<1xf32>
    %14 = vector.shape_cast %13 : vector<1xf32> to vector<1x1xf32>
    %15 = arith.addf %12, %14 : vector<1x1xf32>
    %c0_13 = arith.constant 0 : index
    %c0_14 = arith.constant 0 : index
    %16 = vector.load %arg8[%c0_13, %c0_14] : memref<1x1xf32, #tpu.memory_space<vmem>>, vector<1x1xf32>
    tpu.vector_store %arg8[%c0_13, %c0_14], %15 {strides = array<i32>} : memref<1x1xf32, #tpu.memory_space<vmem>>, vector<1x1xf32>,
    %c0_i32_15 = arith.constant 0 : i32
    %17 = arith.cmpi eq, %arg1, %c0_i32_15 : i32
    %18 = arith.extui %17 : i1 to i32
    %c0_i32_16 = arith.constant 0 : i32
    %19 = arith.cmpi ne, %18, %c0_i32_16 : i32
    scf.if %19 {
      %c0_17 = arith.constant 0 : index
      %c0_18 = arith.constant 0 : index
      %20 = vector.load %arg8[%c0_17, %c0_18] : memref<1x1xf32, #tpu.memory_space<vmem>>, vector<1x1xf32>
      %cst_19 = arith.constant 9.99999971E-10 : f32
      %21 = vector.broadcast %cst_19 : f32 to vector<1x1xf32>
      %22 = arith.maximumf %20, %21 : vector<1x1xf32>
      %c0_20 = arith.constant 0 : index
      %c0_21 = arith.constant 0 : index
      %23 = vector.load %arg7[%c0_20, %c0_21] : memref<1x32xf32, #tpu.memory_space<vmem>>, vector<1x32xf32>
      %24 = tpu.reciprocal %22 {approx = true} : vector<1x1xf32> -> vector<1x1xf32>
      %25 = vector.broadcast %24 : vector<1x1xf32> to vector<1x32xf32>
      %26 = arith.mulf %23, %25 : vector<1x32xf32>
      %c0_22 = arith.constant 0 : index
      %c0_23 = arith.constant 0 : index
      %27 = vector.load %arg4[%c0_22, %c0_23] : memref<32x128xf32, #tpu.memory_space<vmem>>, vector<32x128xf32>
      %cst_24 = arith.constant dense<0.000000e+00> : vector<1x128xf32>
      %28 = tpu.matmul %26, %27, %cst_24 {dimension_numbers = #tpu.dot_dimension_numbers<[1], [0], [0], [1], [0, 0, 1, 1], [], []>} : vector<1x32xf32>, vector<32x128xf32>, vector<1x128xf32> -> vector<1x128xf32>
      %c0_25 = arith.constant 0 : index
      %c0_26 = arith.constant 0 : index
      %29 = vector.load %arg5[%c0_25, %c0_26] : memref<1x128xf32, #tpu.memory_space<vmem>>, vector<1x128xf32>
      %30 = arith.addf %28, %29 : vector<1x128xf32>
      %31 = vector.shape_cast %30 : vector<1x128xf32> to vector<1x1x128xf32>
      %c0_27 = arith.constant 0 : index
      %c0_28 = arith.constant 0 : index
      %c0_29 = arith.constant 0 : index
      %32 = vector.load %arg6[%c0_27, %c0_28, %c0_29] : memref<1x1x128xf32, #tpu.memory_space<vmem>>, vector<1x1x128xf32>
      tpu.vector_store %arg6[%c0_27, %c0_28, %c0_29], %31 {strides = array<i32>} : memref<1x1x128xf32, #tpu.memory_space<vmem>>, vector<1x1x128xf32>,
    } else {
    }
    return
  }
  func.func @transform_0(%arg0: i32, %arg1: i32) -> (i32, i32, i32) {
    %c0_i32 = arith.constant 0 : i32
    %c0_i32_0 = arith.constant 0 : i32
    return %arg0, %arg1, %c0_i32 : i32, i32, i32
  }
  func.func @transform_1(%arg0: i32, %arg1: i32) -> (i32, i32, i32) {
    %c0_i32 = arith.constant 0 : i32
    %c0_i32_0 = arith.constant 0 : i32
    return %arg0, %c0_i32, %arg1 : i32, i32, i32
  }
  func.func @transform_2(%arg0: i32, %arg1: i32) -> (i32, i32) {
    %c0_i32 = arith.constant 0 : i32
    %c0_i32_0 = arith.constant 0 : i32
    %c0_i32_1 = arith.constant 0 : i32
    return %c0_i32, %c0_i32_0 : i32, i32
  }
  func.func @transform_3(%arg0: i32, %arg1: i32) -> (i32, i32) {
    %c0_i32 = arith.constant 0 : i32
    %c0_i32_0 = arith.constant 0 : i32
    %c0_i32_1 = arith.constant 0 : i32
    return %c0_i32, %c0_i32_0 : i32, i32
  }
  func.func @transform_4(%arg0: i32, %arg1: i32) -> (i32, i32, i32) {
    %c0_i32 = arith.constant 0 : i32
    %c0_i32_0 = arith.constant 0 : i32
    %c0_i32_1 = arith.constant 0 : i32
    return %arg0, %c0_i32, %c0_i32_0 : i32, i32, i32
  }
}

</mosaic_0001>

<llo_original>
// kernel: tpu_custom_call.1
$region0: #{tpu_custom_call.1}
  #allocation0 [shape = 'u32[]', space=smem, size = 0x4, offset = 0x4, fixed_abs, tag = 'smem constant byte address 0x4 - core index']
  #allocation1 [shape = 'u32[144,128]{1,0:T(1,128)}', space=vmem, size = 0x12000, scoped, tag = 'internal scratch']
  #allocation2 [shape = 'f32[1,32]{1,0:T(1,128)}', space=vmem, size = 0x200, scoped, tag = 'scratch operand']
  #allocation3 [shape = 'f32[1,1]{1,0:T(1,128)}', space=vmem, size = 0x200, scoped, tag = 'scratch operand']
  %s0 = inlined_call_operand.hbm [shape: bf16[2,8,32], index: 0, kind: input, shape index: {}]
  %s1 = inlined_call_operand.hbm [shape: f32[2,1,8], index: 1, kind: input, shape index: {}]
  %s2 = inlined_call_operand.hbm [shape: f32[32,128], index: 2, kind: input, shape index: {}]
  %s3 = inlined_call_operand.vmem [shape: f32[1,128], index: 3, kind: input, shape index: {}]
  %s4 = inlined_call_operand.hbm [shape: f32[2,1,128], index: 4, kind: output, shape index: {}]
  %s5 = sld [smem:[#allocation0]]
  $region69: #{tpu_custom_call.1} parent=0
    _
  %s7 = ssub.s32 1, %s5
  %s8 = scalar_select 0, %s7, %s5
  $region1: #{tpu_custom_call.1} parent=0
    #allocation4 [shape = 'u8[4096]{0}', space=vmem, size = 0x1000, scoped, tag = 'input window, operand 0']
    #allocation5 [shape = 's32[2]{0}', space=sflag, size = 0x8, scoped, tag = 'scoped memory for tpu_custom_call.1']
    #allocation6 [shape = 's32[2]{0}', space=sflag, size = 0x8, scoped, tag = 'scoped memory for tpu_custom_call.1']
    #allocation7 [shape = 'u8[1024]{0}', space=vmem, size = 0x400, scoped, tag = 'input window, operand 1']
    #allocation8 [shape = 's32[2]{0}', space=sflag, size = 0x8, scoped, tag = 'scoped memory for tpu_custom_call.1']
    #allocation9 [shape = 'u8[16384]{0}', space=vmem, size = 0x4000, scoped, tag = 'input window, operand 2, single buffered']
    #allocation10 [shape = 'u8[1024]{0}', space=vmem, size = 0x400, scoped, tag = 'output window, operand 0']
    %9 = vsyncpa [#allocation5], 0
    %s10 = scalar_lea.sflag [#allocation5], 1
    %11 = vsyncpa %s10, 0
    %12 = vsyncpa [#allocation8], 0
    %s13 = scalar_lea.sflag [#allocation8], 1
    %14 = vsyncpa %s13, 0
    %15 = vsyncpa [#allocation6], 0
    %s16 = scalar_lea.sflag [#allocation6], 1
    %17 = vsyncpa %s16, 0
    loop: start=0, step=1, limit=4
    $region2: #{tpu_custom_call.1} parent=1 // loop_pre_header
      _
    $region3: #{tpu_custom_call.1} parent=1 // loop_header
      %s19 = sphi 0, %s23
      %p20 = scmp.ge.s32.totalorder %s19, 4
      %s26 = sphi 0, %s38
      %s27 = sphi 0, %s34
      %s28 = sphi 0, %s26
      %s29 = sphi 0, %s27
      %s30 = sphi 0, %s28
      %s31 = sphi 0, %s29
      %s43 = sphi 0, %s45
      %s46 = sphi 0, %s43
      %s47 = sphi 0, %s46
      %s63 = sphi 0, %s47
      %s71 = sphi 0, %s73
      %s74 = sphi 0, %s71
      %s75 = sphi 0, %s74
      %s91 = sphi 0, %s75
      %s95 = sphi 0, %s95
      %s97 = sphi 0, %s95
      %s98 = sphi 0, %s97
      %s112 = sphi 0, %s98
      %s116 = sphi 0, %s116
      %s118 = sphi 0, %s116
      %s119 = sphi 0, %s118
      %s133 = sphi 0, %s119
      %s139 = sphi 0, %s141
      %s142 = sphi 0, %s139
      %s143 = sphi 0, %s142
      %s159 = sphi 0, %s143
    $region4: #{tpu_custom_call.1} parent=1 // loop_header_branch
      %22 = sbr.rel (%p20) target = $region8
    $region5: #{tpu_custom_call.1} parent=1 // loop_body
      %s24 = ssub.s32 %s19, 1
      %s25 = ssub.s32 %s19, 2
      %s32 = sadd.s32 1, %s27
      %p33 = scmp.ge.s32.totalorder %s32, 1
      %s34 = scalar_select %p33, 0, %s32
      %s35 = sadd.s32 1, %s26
      %s36 = scalar_select %p33, %s35, %s26
      %p37 = scmp.ge.s32.totalorder %s36, 2
      %s38 = scalar_select %p37, 0, %s36
      %s39 = ssub.s32 %s26, %s38
      %s40 = ssub.s32 %s27, %s34
      %s41 = sor.u32 %s39, %s40
      %p42 = scmp.eq.s32.totalorder %s41, 0
      %s44 = sadd.s32 %s43, 1
      %s45 = scalar_select %p42, %s43, %s44
      %p48 = pneg %p42
      %p49 = scmp.eq.s32.totalorder %s19, 1
      %p50 = por %p48, %p49
      %p51 = scmp.ne.s32.totalorder %s43, %s46
      %p52 = scmp.eq.s32.totalorder %s19, 0
      %p53 = por %p51, %p52
      %p54 = scmp.ne.s32.totalorder %s43, %s46
      %p55 = scmp.eq.s32.totalorder %s24, 1
      %p56 = por %p54, %p55
      %p57 = scmp.ne.s32.totalorder %s46, %s47
      %p58 = scmp.eq.s32.totalorder %s24, 0
      %p59 = por %p57, %p58
      %p60 = scmp.ne.s32.totalorder %s46, %s47
      %p61 = scmp.eq.s32.totalorder %s25, 1
      %p62 = por %p60, %p61
      %p64 = scmp.ne.s32.totalorder %s47, %s63
      %p65 = scmp.eq.s32.totalorder %s25, 0
      %p66 = por %p64, %p65
      %s67 = ssub.s32 %s26, %s38
      %s68 = ssub.s32 %s27, %s34
      %s69 = sor.u32 %s67, %s68
      %p70 = scmp.eq.s32.totalorder %s69, 0
      %s72 = sadd.s32 %s71, 1
      %s73 = scalar_select %p70, %s71, %s72
      %p76 = pneg %p70
      %p77 = scmp.eq.s32.totalorder %s19, 1
      %p78 = por %p76, %p77
      %p79 = scmp.ne.s32.totalorder %s71, %s74
      %p80 = scmp.eq.s32.totalorder %s19, 0
      %p81 = por %p79, %p80
      %p82 = scmp.ne.s32.totalorder %s71, %s74
      %p83 = scmp.eq.s32.totalorder %s24, 1
      %p84 = por %p82, %p83
      %p85 = scmp.ne.s32.totalorder %s74, %s75
      %p86 = scmp.eq.s32.totalorder %s24, 0
      %p87 = por %p85, %p86
      %p88 = scmp.ne.s32.totalorder %s74, %s75
      %p89 = scmp.eq.s32.totalorder %s25, 1
      %p90 = por %p88, %p89
      %p92 = scmp.ne.s32.totalorder %s75, %s91
      %p93 = scmp.eq.s32.totalorder %s25, 0
      %p94 = por %p92, %p93
      %s96 = sadd.s32 %s95, 1
      %p99 = scmp.eq.s32.totalorder %s19, 1
      %p100 = scmp.ne.s32.totalorder %s95, %s97
      %p101 = scmp.eq.s32.totalorder %s19, 0
      %p102 = por %p100, %p101
      %p103 = scmp.ne.s32.totalorder %s95, %s97
      %p104 = scmp.eq.s32.totalorder %s24, 1
      %p105 = por %p103, %p104
      %p106 = scmp.ne.s32.totalorder %s97, %s98
      %p107 = scmp.eq.s32.totalorder %s24, 0
      %p108 = por %p106, %p107
      %p109 = scmp.ne.s32.totalorder %s97, %s98
      %p110 = scmp.eq.s32.totalorder %s25, 1
      %p111 = por %p109, %p110
      %p113 = scmp.ne.s32.totalorder %s98, %s112
      %p114 = scmp.eq.s32.totalorder %s25, 0
      %p115 = por %p113, %p114
      %s117 = sadd.s32 %s116, 1
      %p120 = scmp.eq.s32.totalorder %s19, 1
      %p121 = scmp.ne.s32.totalorder %s116, %s118
      %p122 = scmp.eq.s32.totalorder %s19, 0
      %p123 = por %p121, %p122
      %p124 = scmp.ne.s32.totalorder %s116, %s118
      %p125 = scmp.eq.s32.totalorder %s24, 1
      %p126 = por %p124, %p125
      %p127 = scmp.ne.s32.totalorder %s118, %s119
      %p128 = scmp.eq.s32.totalorder %s24, 0
      %p129 = por %p127, %p128
      %p130 = scmp.ne.s32.totalorder %s118, %s119
      %p131 = scmp.eq.s32.totalorder %s25, 1
      %p132 = por %p130, %p131
      %p134 = scmp.ne.s32.totalorder %s119, %s133
      %p135 = scmp.eq.s32.totalorder %s25, 0
      %p136 = por %p134, %p135
      %s137 = ssub.s32 %s26, %s38
      %p138 = scmp.eq.s32.totalorder %s137, 0
      %s140 = sadd.s32 %s139, 1
      %s141 = scalar_select %p138, %s139, %s140
      %p144 = pneg %p138
      %p145 = scmp.eq.s32.totalorder %s19, 1
      %p146 = por %p144, %p145
      %p147 = scmp.ne.s32.totalorder %s139, %s142
      %p148 = scmp.eq.s32.totalorder %s19, 0
      %p149 = por %p147, %p148
      %p150 = scmp.ne.s32.totalorder %s139, %s142
      %p151 = scmp.eq.s32.totalorder %s24, 1
      %p152 = por %p150, %p151
      %p153 = scmp.ne.s32.totalorder %s142, %s143
      %p154 = scmp.eq.s32.totalorder %s24, 0
      %p155 = por %p153, %p154
      %p156 = scmp.ne.s32.totalorder %s142, %s143
      %p157 = scmp.eq.s32.totalorder %s25, 1
      %p158 = por %p156, %p157
      %p160 = scmp.ne.s32.totalorder %s143, %s159
      %p161 = scmp.eq.s32.totalorder %s25, 0
      %p162 = por %p160, %p161
      %p163 = scmp.le.s32.totalorder 1, %s19
      %p164 = scmp.lt.s32.totalorder %s19, 3
      %p165 = pnand %p163, %p164
      %p166 = pneg %p165
      // Predicated region
      $region9: #{tpu_custom_call.1} parent=5 // pred_check
        _
      $region10: #{tpu_custom_call.1} parent=5 // pred_check_branch
        %168 = sbr.rel (%p165) target = $region12
      $region11: #{tpu_custom_call.1} parent=5 // pred_region
        %s169 = ssub.s32 %s19, 1
        // Predicated region
        $region13: #{tpu_custom_call.1} parent=11 // pred_check
          %p170 = pneg %p108
        $region14: #{tpu_custom_call.1} parent=11 // pred_check_branch
          %172 = sbr.rel (%p170) target = $region16
        $region15: #{tpu_custom_call.1} parent=11 // pred_region
          %s174 = ssub.s32 512, 512
          %175 = vsyncadd [#allocation8], %s174
          %s176 = sshll.u32 [#allocation9], 4
          %s177 = int_to_ptr.vmem [resolvable:$true] %s176
          %182 = dma.hbm_to_vmem [thread:$0]  %s2, 512, %s177, [#allocation8], 128, 128, 8
        $region16: #{tpu_custom_call.1} parent=11 // pred_fallthru
          _
        // Predicated region
        $region17: #{tpu_custom_call.1} parent=11 // pred_check
          %p183 = pneg %p129
        $region18: #{tpu_custom_call.1} parent=11 // pred_check_branch
          %185 = sbr.rel (%p183) target = $region20
        $region19: #{tpu_custom_call.1} parent=11 // pred_region
          _
        $region20: #{tpu_custom_call.1} parent=11 // pred_fallthru
          _
      $region12: #{tpu_custom_call.1} parent=5 // pred_fallthru
        _
      %p186 = scmp.lt.s32.totalorder %s19, 2
      // Predicated region
      $region21: #{tpu_custom_call.1} parent=5 // pred_check
        %p187 = pneg %p186
      $region22: #{tpu_custom_call.1} parent=5 // pred_check_branch
        %189 = sbr.rel (%p187) target = $region24
      $region23: #{tpu_custom_call.1} parent=5 // pred_region
        // Predicated region
        $region25: #{tpu_custom_call.1} parent=23 // pred_check
          %p190 = pneg %p53
        $region26: #{tpu_custom_call.1} parent=23 // pred_check_branch
          %192 = sbr.rel (%p190) target = $region28
        $region27: #{tpu_custom_call.1} parent=23 // pred_region
          %s193 = sand.u32 %s43, 1
          %s194 = scalar_lea.sflag [#allocation5], %s193
          %s195 = sand.u32 %s43, 1
          %s196 = smul.addr %s195, 4
          %s197 = scalar_lea.vmem [#allocation4], %s196
          %s199 = ssub.s32 64, 64
          %200 = vsyncadd %s194, %s199
          %s201 = sadd.s32 %s27, %s26
          %s202 = smul.addr %s201, 64
          %s203 = scalar_lea.hbm %s0, %s202
          %s205 = sshll.u32 %s197, 4
          %s206 = int_to_ptr.vmem [resolvable:$true] %s205
          %208 = dma.hbm_to_vmem [thread:$0]  %s203, 64, %s206, %s194
        $region28: #{tpu_custom_call.1} parent=23 // pred_fallthru
          _
        // Predicated region
        $region29: #{tpu_custom_call.1} parent=23 // pred_check
          %p209 = pneg %p81
        $region30: #{tpu_custom_call.1} parent=23 // pred_check_branch
          %211 = sbr.rel (%p209) target = $region32
        $region31: #{tpu_custom_call.1} parent=23 // pred_region
          %s212 = sand.u32 %s19, 1
          %s213 = scalar_lea.sflag [#allocation8], %s212
          %s214 = sand.u32 %s71, 1
          %s215 = scalar_lea.vmem [#allocation7], %s214
          %s217 = ssub.s32 16, 16
          %218 = vsyncadd %s213, %s217
          %s219 = sadd.s32 %s27, %s26
          %s220 = smul.addr %s219, 16
          %s221 = scalar_lea.hbm %s1, %s220
          %s223 = sshll.u32 %s215, 4
          %s224 = int_to_ptr.vmem [resolvable:$true] %s223
          %226 = dma.hbm_to_vmem [thread:$0]  %s221, 16, %s224, %s213
        $region32: #{tpu_custom_call.1} parent=23 // pred_fallthru
          _
      $region24: #{tpu_custom_call.1} parent=5 // pred_fallthru
        _
      %p227 = scmp.le.s32.totalorder 1, %s19
      %p228 = scmp.lt.s32.totalorder %s19, 3
      %p229 = pnand %p227, %p228
      %p230 = pneg %p229
      // Predicated region
      $region33: #{tpu_custom_call.1} parent=5 // pred_check
        _
      $region34: #{tpu_custom_call.1} parent=5 // pred_check_branch
        %232 = sbr.rel (%p229) target = $region36
      $region35: #{tpu_custom_call.1} parent=5 // pred_region
        %s233 = ssub.s32 %s19, 1
        %s234 = sand.u32 %s46, 1
        %s235 = scalar_lea.sflag [#allocation5], %s234
        %s236 = sand.u32 %s46, 1
        %s237 = smul.addr %s236, 4
        %s238 = scalar_lea.vmem [#allocation4], %s237
        // Predicated region
        $region37: #{tpu_custom_call.1} parent=35 // pred_check
          %p239 = pneg %p59
        $region38: #{tpu_custom_call.1} parent=35 // pred_check_branch
          %241 = sbr.rel (%p239) target = $region40
        $region39: #{tpu_custom_call.1} parent=35 // pred_region
          %242 = dma.done %s235, 64
        $region40: #{tpu_custom_call.1} parent=35 // pred_fallthru
          _
        %s243 = sand.u32 %s24, 1
        %s244 = scalar_lea.sflag [#allocation8], %s243
        %s245 = sand.u32 %s74, 1
        %s246 = scalar_lea.vmem [#allocation7], %s245
        // Predicated region
        $region41: #{tpu_custom_call.1} parent=35 // pred_check
          %p247 = pneg %p87
        $region42: #{tpu_custom_call.1} parent=35 // pred_check_branch
          %249 = sbr.rel (%p247) target = $region44
        $region43: #{tpu_custom_call.1} parent=35 // pred_region
          %250 = dma.done %s244, 16
        $region44: #{tpu_custom_call.1} parent=35 // pred_fallthru
          _
        // Predicated region
        $region45: #{tpu_custom_call.1} parent=35 // pred_check
          %p251 = pneg %p108
        $region46: #{tpu_custom_call.1} parent=35 // pred_check_branch
          %253 = sbr.rel (%p251) target = $region48
        $region47: #{tpu_custom_call.1} parent=35 // pred_region
          %254 = dma.done [#allocation8], 512
        $region48: #{tpu_custom_call.1} parent=35 // pred_fallthru
          _
        %s255 = sand.u32 %s46, 1
        %s256 = scalar_lea.sflag [#allocation5], %s255
        %s257 = sand.u32 %s46, 1
        %s258 = smul.addr %s257, 4
        %s259 = scalar_lea.vmem [#allocation4], %s258
        %p260 = pneg %p59
        %p261 = pneg %p56
        %s262 = sand.u32 %s24, 1
        %s263 = scalar_lea.sflag [#allocation8], %s262
        %s264 = sand.u32 %s74, 1
        %s265 = scalar_lea.vmem [#allocation7], %s264
        %p266 = pneg %p87
        %p267 = pneg %p84
        %p268 = pneg %p108
        %p269 = pneg %p105
        %p270 = pneg %p129
        %p271 = pneg %p126
        %p272 = pneg %p155
        %p273 = pneg %p152
        %s274 = sand.u32 %s142, 1
        %s275 = scalar_lea.sflag [#allocation6], %s274
        %s276 = sand.u32 %s142, 1
        %s277 = scalar_lea.vmem [#allocation10], %s276
        %p279 = scmp.eq.s32.totalorder %s29, 0
        // Predicated region
        $region49: #{tpu_custom_call.1} parent=35 // pred_check
          %p280 = pneg %p279
        $region50: #{tpu_custom_call.1} parent=35 // pred_check_branch
          %282 = sbr.rel (%p280) target = $region52
        $region51: #{tpu_custom_call.1} parent=35 // pred_region
          %vm283 = vcmask 253952
          %284 = vst.msk [vmem:[#allocation2] sm:$0x1] %vm283, 0.0
          %vm285 = vcmask 0
          %286 = vst.msk [vmem:[#allocation3] sm:$0x1] %vm285, 0.0
        $region52: #{tpu_custom_call.1} parent=35 // pred_fallthru
          _
        %v287 = vld [vmem:[%s238] sm:$0xf]
        %v288 = vld [vmem:[%s246] sm:$0x1]
        %v289 = vld [vmem:[#allocation2] sm:$0x1]
        %v290 = vpack.c.bf16 %v288, %v288
        %vm291 = vcmask 64512
        %v293 = vsel %vm291, %v290, 0
        %vm295 = vcmask 1043456
        %v297 = vsel %vm295, %v287, 0
        %299 = vmatprep.subr.bf16.mxu0 0
        %300 = vmatpush1.bf16.msra.mxu0 0
        %301 = vmatprep.subr.bf16.mxu0 0
        %302 = vmatpush1.bf16.msra.mxu0 0
        %303 = vmatprep.subr.bf16.mxu0 0
        %304 = vmatpush1.bf16.msra.mxu0 0
        %305 = vmatprep.subr.bf16.mxu0 0
        %306 = vmatpush1.bf16.msra.mxu0 0
        %307 = vmatprep.subr.bf16.mxu0 0
        %308 = vmatpush1.bf16.msra.mxu0 0
        %309 = vmatprep.subr.bf16.mxu0 0
        %310 = vmatpush1.bf16.msra.mxu0 0
        %311 = vmatprep.subr.bf16.mxu0 0
        %312 = vmatpush1.bf16.msra.mxu0 0
        %313 = vmatprep.subr.bf16.mxu0 0
        %314 = vmatpush1.bf16.msra.mxu0 %v297
        %315 = vmatprep.subr.bf16.mxu0 0
        %316 = vmatpush2.bf16.msra.mxu0 0
        %317 = vmatprep.subr.bf16.mxu0 0
        %318 = vmatpush2.bf16.msra.mxu0 0
        %319 = vmatprep.subr.bf16.mxu0 0
        %320 = vmatpush2.bf16.msra.mxu0 0
        %321 = vmatprep.subr.bf16.mxu0 0
        %322 = vmatpush2.bf16.msra.mxu0 0
        %323 = vmatprep.subr.bf16.mxu0 0
        %324 = vmatpush2.bf16.msra.mxu0 0
        %325 = vmatprep.subr.bf16.mxu0 0
        %326 = vmatpush2.bf16.msra.mxu0 0
        %327 = vmatprep.subr.bf16.mxu0 0
        %328 = vmatpush2.bf16.msra.mxu0 0
        %329 = vmatprep.subr.bf16.mxu0 0
        %330 = vmatpush2.bf16.msra.mxu0 0
        %331 = vmatprep.mubr.bf16.mxu0 0
        %332 = vmatmul.mubr.bf16.gmra.mxu0 %v293
        %v333 = vpop.f32.mrf.mxu0
        %v334 = vadd.f32 0.0, %v333
        %v335 = vpop.f32.mrf.mxu0
        %v336 = vpop.f32.mrf.mxu0
        %v337 = vpop.f32.mrf.mxu0
        %338 = vdwg.mxu0
        %v339 = vadd.f32 %v289, %v334
        %vm340 = vcmask 253952
        %341 = vst.msk [vmem:[#allocation2] sm:$0x1] %vm340, %v339
        %v342 = vld [vmem:[#allocation3] sm:$0x1]
        %vm343 = vcmask 57344
        %v344 = vsel %vm343, %v288, 0.0
        %345 = vadd.xlane.f32.xlu0 %v344
        %v346 = vpop.xlane.xlu0 %345
        %v347 = vadd.f32 %v342, %v346
        %vm348 = vcmask 0
        %349 = vst.msk [vmem:[#allocation3] sm:$0x1] %vm348, %v347
        // Predicated region
        $region53: #{tpu_custom_call.1} parent=35 // pred_check
          %p350 = pneg %p279
        $region54: #{tpu_custom_call.1} parent=35 // pred_check_branch
          %352 = sbr.rel (%p350) target = $region56
        $region55: #{tpu_custom_call.1} parent=35 // pred_region
          %v353 = vld [vmem:[#allocation3] sm:$0x1]
          %v354 = vmax.f32 %v353, 1e-09
          %v355 = vld [vmem:[#allocation2] sm:$0x1]
          %v356 = vrcp.pop %v354
          %358 = vset.pattern.permute.xlu0 0
          %359 = vperm.xlu0 %358, %v356
          %v360 = vpop.permute.xlu0 %359
          %v362 = vlaneseq
          %v363 = vshrl.u32 %v362, 7
          %v364 = vsub.s32 0, %v363
          %v365 = vrot.slane %v360, %v364
          %v366 = vmul.f32 %v355, %v365
          %v367 = vld [vmem:[#allocation9] sm:$0xff]
          %v368 = vld [vmem:[#allocation9 + $0x8] sm:$0xff]
          %v369 = vld [vmem:[#allocation9 + $0x10] sm:$0xff]
          %v370 = vld [vmem:[#allocation9 + $0x18] sm:$0xff]
          %v371 = vld [vmem:[%s3] sm:$0x1]
          %vm372 = vcmask 261120
          %v374 = vsel %vm372, %v366, 0
          %376 = vmatprep.subr.mxu0 0.0
          %377 = vmatpush1.msra.mxu0 0.0
          %378 = vmatprep.subr.mxu0 0.0
          %379 = vmatpush1.msra.mxu0 0.0
          %380 = vmatprep.subr.mxu0 0.0
          %381 = vmatpush1.msra.mxu0 0.0
          %382 = vmatprep.subr.mxu0 0.0
          %383 = vmatpush1.msra.mxu0 0.0
          %384 = vmatprep.subr.mxu0 0.0
          %385 = vmatpush1.msra.mxu0 0.0
          %386 = vmatprep.subr.mxu0 0.0
          %387 = vmatpush1.msra.mxu0 0.0
          %388 = vmatprep.subr.mxu0 0.0
          %389 = vmatpush1.msra.mxu0 0.0
          %390 = vmatprep.subr.mxu0 0.0
          %391 = vmatpush1.msra.mxu0 0.0
          %392 = vmatprep.subr.mxu0 0.0
          %393 = vmatpush1.msra.mxu0 0.0
          %394 = vmatprep.subr.mxu0 0.0
          %395 = vmatpush1.msra.mxu0 0.0
          %396 = vmatprep.subr.mxu0 0.0
          %397 = vmatpush1.msra.mxu0 0.0
          %398 = vmatprep.subr.mxu0 0.0
          %399 = vmatpush1.msra.mxu0 0.0
          %400 = vmatprep.subr.mxu0 0.0
          %401 = vmatpush1.msra.mxu0 %v370
          %402 = vmatprep.subr.mxu0 0.0
          %403 = vmatpush1.msra.mxu0 %v369
          %404 = vmatprep.subr.mxu0 0.0
          %405 = vmatpush1.msra.mxu0 %v368
          %406 = vmatprep.subr.mxu0 0.0
          %407 = vmatpush1.msra.mxu0 %v367
          %408 = vmatprep.subr.mxu0 0.0
          %409 = vmatpush2.msra.mxu0 0.0
          %410 = vmatprep.subr.mxu0 0.0
          %411 = vmatpush2.msra.mxu0 0.0
          %412 = vmatprep.subr.mxu0 0.0
          %413 = vmatpush2.msra.mxu0 0.0
          %414 = vmatprep.subr.mxu0 0.0
          %415 = vmatpush2.msra.mxu0 0.0
          %416 = vmatprep.subr.mxu0 0.0
          %417 = vmatpush2.msra.mxu0 0.0
          %418 = vmatprep.subr.mxu0 0.0
          %419 = vmatpush2.msra.mxu0 0.0
          %420 = vmatprep.subr.mxu0 0.0
          %421 = vmatpush2.msra.mxu0 0.0
          %422 = vmatprep.subr.mxu0 0.0
          %423 = vmatpush2.msra.mxu0 0.0
          %424 = vmatprep.subr.mxu0 0.0
          %425 = vmatpush2.msra.mxu0 0.0
          %426 = vmatprep.subr.mxu0 0.0
          %427 = vmatpush2.msra.mxu0 0.0
          %428 = vmatprep.subr.mxu0 0.0
          %429 = vmatpush2.msra.mxu0 0.0
          %430 = vmatprep.subr.mxu0 0.0
          %431 = vmatpush2.msra.mxu0 0.0
          %432 = vmatprep.subr.mxu0 0.0
          %433 = vmatpush2.msra.mxu0 0.0
          %434 = vmatprep.subr.mxu0 0.0
          %435 = vmatpush2.msra.mxu0 0.0
          %436 = vmatprep.subr.mxu0 0.0
          %437 = vmatpush2.msra.mxu0 0.0
          %438 = vmatprep.subr.mxu0 0.0
          %439 = vmatpush2.msra.mxu0 0.0
          %440 = vmatprep.mubr.f32.mxu0 0.0
          %441 = vmatmul.mubr.f32.gmra.mxu0 %v374
          %v442 = vpop.f32.mrf.mxu0
          %v443 = vadd.f32 %v371, %v442
          %v444 = vpop.f32.mrf.mxu0
          %445 = vdwg.mxu0
          %446 = vst [vmem:[%s277] sm:$0x1] %v443
        $region56: #{tpu_custom_call.1} parent=35 // pred_fallthru
          _
        %s447 = sand.u32 %s142, 1
        %s448 = scalar_lea.sflag [#allocation6], %s447
        %s449 = sand.u32 %s142, 1
        %s450 = scalar_lea.vmem [#allocation10], %s449
        // Predicated region
        $region57: #{tpu_custom_call.1} parent=35 // pred_check
          %p451 = pneg %p152
        $region58: #{tpu_custom_call.1} parent=35 // pred_check_branch
          %453 = sbr.rel (%p451) target = $region60
        $region59: #{tpu_custom_call.1} parent=35 // pred_region
          %s455 = ssub.s32 16, 16
          %456 = vsyncadd %s448, %s455
          %s457 = smul.addr %s28, 16
          %s458 = scalar_lea.hbm %s4, %s457
          %s460 = sshll.u32 %s450, 4
          %s461 = int_to_ptr.vmem [resolvable:$true] %s460
          %463 = dma.vmem_to_hbm [thread:$0]  %s461, 16, %s458, %s448
        $region60: #{tpu_custom_call.1} parent=35 // pred_fallthru
          _
      $region36: #{tpu_custom_call.1} parent=5 // pred_fallthru
        _
      %p464 = scmp.le.s32.totalorder 2, %s19
      // Predicated region
      $region61: #{tpu_custom_call.1} parent=5 // pred_check
        %p465 = pneg %p464
      $region62: #{tpu_custom_call.1} parent=5 // pred_check_branch
        %467 = sbr.rel (%p465) target = $region64
      $region63: #{tpu_custom_call.1} parent=5 // pred_region
        %s468 = ssub.s32 %s19, 2
        // Predicated region
        $region65: #{tpu_custom_call.1} parent=63 // pred_check
          %p469 = pneg %p158
        $region66: #{tpu_custom_call.1} parent=63 // pred_check_branch
          %471 = sbr.rel (%p469) target = $region68
        $region67: #{tpu_custom_call.1} parent=63 // pred_region
          %s472 = sand.u32 %s143, 1
          %s473 = scalar_lea.sflag [#allocation6], %s472
          %s474 = sand.u32 %s143, 1
          %s475 = scalar_lea.vmem [#allocation10], %s474
          %476 = dma.done %s473, 16
        $region68: #{tpu_custom_call.1} parent=63 // pred_fallthru
          _
      $region64: #{tpu_custom_call.1} parent=5 // pred_fallthru
        _
    $region6: #{tpu_custom_call.1} parent=1 // loop_footer
      %s23 = sadd.s32 1, %s19
    $region7: #{tpu_custom_call.1} parent=1 // loop_footer_branch
      %18 = sbr.rel target = $region3
    $region8: #{tpu_custom_call.1} parent=1 // loop_exit
      _
    %477 = vsyncpa [#allocation5], 1
    %s478 = scalar_lea.sflag [#allocation5], 1
    %479 = vsyncpa %s478, 1
    %480 = vsyncpa [#allocation8], 1
    %s481 = scalar_lea.sflag [#allocation8], 1
    %482 = vsyncpa %s481, 1
    %483 = vsyncpa [#allocation6], 1
    %s484 = scalar_lea.sflag [#allocation6], 1
    %485 = vsyncpa %s484, 1

</llo_original>
